<compile_context>
chip_gen: v5e
topology: v5e:2x2
jax: 0.10.0
libtpu: 0.0.40
codegen_flags: <defaults>
</compile_context>

<pallas_src>
import functools

import jax
import jax.numpy as jnp
from jax import lax
from jax.experimental import pallas as pl
from jax.experimental.pallas import tpu as pltpu


def _cc_loss_kernel(x1_ref, x2_ref, c1_ref, c2_ref, out_ref, *,
                    temperature, alpha):
    inv_t = jnp.float32(1.0 / temperature)

    x1 = x1_ref[...]                       # (B, D) f32
    x2 = x2_ref[...]                       # (B, D) f32
    c1 = c1_ref[...]                       # (B, K) f32
    c2 = c2_ref[...]                       # (B, K) f32
    b = x1.shape[0]
    k = c1.shape[1]

    def diag_mask(n):
        r = lax.broadcasted_iota(jnp.int32, (n, n), 0)
        c = lax.broadcasted_iota(jnp.int32, (n, n), 1)
        return r == c

    def masked_row_lse_sum(s, mask):
        # sum_i logsumexp_j s[i, j], diagonal excluded; all math f32.
        s = jnp.where(mask, jnp.float32(-1e30), s)
        m = jnp.max(s, axis=-1, keepdims=True)
        se = jnp.sum(jnp.exp(s - m), axis=-1, keepdims=True)
        return jnp.sum(jnp.log(se) + m)

    mask_inst = diag_mask(2 * b)
    mask_clu = mask_inst if (2 * k) == (2 * b) else diag_mask(2 * k)

    # ----------------- instance head: ONE fused (2B,2B) Gram + ONE LSE -------
    z = jnp.concatenate([x1, x2], axis=0)                      # (2B, D), VMEM
    s_inst = lax.dot_general(z, z, (((1,), (1,)), ((), ())),
                             preferred_element_type=jnp.float32) * inv_t
    lse_inst = masked_row_lse_sum(s_inst, mask_inst)
    # positives sit at sim[i, i+B] and sim[i+B, i] -> 2 * sum(<x1_i, x2_i>) / t
    pos_inst = (2.0 * inv_t) * jnp.sum(x1 * x2)
    loss_inst = (lse_inst - pos_inst) * jnp.float32(1.0 / (2 * b))

    # ----------------- cluster head: ONE fused (2K,2K) cosine Gram + ONE LSE -
    c = jnp.concatenate([c1, c2], axis=1)                      # (B, 2K)
    col_sum = jnp.sum(c, axis=0, keepdims=True)                # (1, 2K) shared
    col_sumsq = jnp.sum(c * c, axis=0, keepdims=True)          # (1, 2K) shared
    cn = c * lax.rsqrt(jnp.maximum(col_sumsq, jnp.float32(1e-16)))
    # contract the batch axis (axis 0) directly -> no transpose of cn needed
    s_clu = lax.dot_general(cn, cn, (((0,), (0,)), ((), ())),
                            preferred_element_type=jnp.float32) * inv_t
    lse_clu = masked_row_lse_sum(s_clu, mask_clu)
    pos_clu = (2.0 * inv_t) * jnp.sum(cn[:, :k] * cn[:, k:])
    loss_clu = (lse_clu - pos_clu) * jnp.float32(1.0 / (2 * k))

    # ----------------- entropy regularizer (reuses col_sum) ------------------
    def entropy(col):                       # col: (1, K) column sums of c_i
        tot = jnp.sum(col, axis=-1, keepdims=True)             # (1, 1)
        p = col * pl.reciprocal(tot, approx=True)
        # clamp is an intentional deviation from the reference (avoids NaN for
        # a ~0 cluster column)
        return jnp.sum(p * jnp.log(jnp.maximum(p, jnp.float32(1e-12))))

    h = entropy(col_sum[:, :k]) + entropy(col_sum[:, k:])

    out_ref[0] = (jnp.float32(alpha) * loss_inst
                  + jnp.float32(1.0 - alpha) * (loss_clu + h))


def cc_loss(x1, c1, x2, c2, *, temperature, alpha=0.5):
    """Forward pass of CCLoss, fused into one grid-less Pallas kernel launch."""
    kernel = functools.partial(_cc_loss_kernel,
                               temperature=float(temperature),
                               alpha=float(alpha))
    out = pl.pallas_call(
        kernel,
        out_shape=jax.ShapeDtypeStruct((1,), jnp.float32),
        # no grid: whole-array VMEM inputs, scalar SMEM output
        in_specs=[pl.BlockSpec(memory_space=pltpu.MemorySpace.VMEM)] * 4,
        out_specs=pl.BlockSpec(memory_space=pltpu.MemorySpace.SMEM),
    )(x1, x2, c1, c2)
    return out[0]


def _cc_loss_ref(x1, c1, x2, c2, temperature, alpha):
    """Pure-JAX f32 reference mirroring the PyTorch module."""
    def ntxent(z, normalize):
        n2 = z.shape[0]
        half = n2 // 2
        if normalize:
            z = z / jnp.maximum(jnp.linalg.norm(z, axis=-1, keepdims=True), 1e-8)
        sim = (z @ z.T) / temperature
        sim_nd = jnp.where(jnp.eye(n2, dtype=bool), -jnp.inf, sim)
        lse = jax.scipy.special.logsumexp(sim_nd, axis=-1)
        pos = sim[jnp.arange(n2), (jnp.arange(n2) + half) % n2]
        return jnp.sum(lse - pos) / n2

    def ent(c):
        p = c.sum(0)
        p = p / p.sum()
        return jnp.sum(p * jnp.log(p))

    inst = ntxent(jnp.concatenate([x1, x2], axis=0), normalize=False)
    clu = ntxent(jnp.concatenate([c1.T, c2.T], axis=0), normalize=True)
    h = ent(c1) + ent(c2)
    return alpha * inst + (1.0 - alpha) * (clu + h)


if __name__ == "__main__":
    temperature = 0.5
    alpha = 0.5
    B, D, K = 8, 32, 8   # batch_size=8, feature dim=32, num_clusters=8

    key = jax.random.PRNGKey(0)
    k1, k2, k3, k4 = jax.random.split(key, 4)
    x1 = jax.random.normal(k1, (B, D), dtype=jnp.float32)
    x2 = jax.random.normal(k2, (B, D), dtype=jnp.float32)
    c1 = jax.nn.softmax(jax.random.normal(k3, (B, K), dtype=jnp.float32), axis=-1)
    c2 = jax.nn.softmax(jax.random.normal(k4, (B, K), dtype=jnp.float32), axis=-1)

    loss_fn = jax.jit(
        functools.partial(cc_loss, temperature=temperature, alpha=alpha))
    loss = jax.block_until_ready(loss_fn(x1, c1, x2, c2))

    assert loss.shape == () and bool(jnp.isfinite(loss)), f"bad loss: {loss}"

    # f32 end-to-end (bf16 casts removed) -> much tighter tolerance than before
    ref = _cc_loss_ref(x1, c1, x2, c2, temperature, alpha)
    assert jnp.allclose(loss, ref, rtol=1e-3, atol=1e-3), f"{loss} vs {ref}"

    print("KERNEL_OK")
</pallas_src>

<mosaic_0001>
module attributes {stable_mosaic.version = 11 : i64} {
  func.func @_cc_loss_kernel(%arg0: memref<8x32xf32, #tpu.memory_space<vmem>>, %arg1: memref<8x32xf32, #tpu.memory_space<vmem>>, %arg2: memref<8x8xf32, #tpu.memory_space<vmem>>, %arg3: memref<8x8xf32, #tpu.memory_space<vmem>>, %arg4: memref<1xf32, #tpu.memory_space<smem>>) attributes {dimension_semantics = [], scalar_prefetch = 0 : i64, scratch_operands = 0 : i64, tpu.core_type = #tpu.core_type<tc>} {
    %c0 = arith.constant 0 : index
    %c0_0 = arith.constant 0 : index
    %0 = vector.load %arg0[%c0, %c0_0] : memref<8x32xf32, #tpu.memory_space<vmem>>, vector<8x32xf32>
    %c0_1 = arith.constant 0 : index
    %c0_2 = arith.constant 0 : index
    %1 = vector.load %arg1[%c0_1, %c0_2] : memref<8x32xf32, #tpu.memory_space<vmem>>, vector<8x32xf32>
    %c0_3 = arith.constant 0 : index
    %c0_4 = arith.constant 0 : index
    %2 = vector.load %arg2[%c0_3, %c0_4] : memref<8x8xf32, #tpu.memory_space<vmem>>, vector<8x8xf32>
    %c0_5 = arith.constant 0 : index
    %c0_6 = arith.constant 0 : index
    %3 = vector.load %arg3[%c0_5, %c0_6] : memref<8x8xf32, #tpu.memory_space<vmem>>, vector<8x8xf32>
    %4 = tpu.iota {dimensions = array<i32: 0>} : vector<16x16xi32>
    %5 = tpu.iota {dimensions = array<i32: 1>} : vector<16x16xi32>
    %6 = arith.cmpi eq, %4, %5 : vector<16x16xi32>
    %7 = tpu.concatenate %0, %1 in 0 : vector<8x32xf32>, vector<8x32xf32> -> vector<16x32xf32>
    %cst = arith.constant dense<0.000000e+00> : vector<16x16xf32>
    %8 = tpu.matmul %7, %7, %cst {dimension_numbers = #tpu.dot_dimension_numbers<[1], [1], [0], [0], [0, 0, 1, 0], [], []>} : vector<16x32xf32>, vector<16x32xf32>, vector<16x16xf32> -> vector<16x16xf32>
    %cst_7 = arith.constant 2.000000e+00 : f32
    %9 = vector.broadcast %cst_7 : f32 to vector<16x16xf32>
    %10 = arith.mulf %8, %9 : vector<16x16xf32>
    %cst_8 = arith.constant -1.000000e+30 : f32
    %11 = vector.broadcast %cst_8 : f32 to vector<16x16xf32>
    %12 = arith.select %6, %11, %10 : vector<16x16xi1>, vector<16x16xf32>
    %cst_9 = arith.constant dense<0xFF800000> : vector<16xf32>
    %13 = vector.multi_reduction <maximumf>, %12, %cst_9 [1] : vector<16x16xf32> to vector<16xf32>
    %14 = vector.shape_cast %13 : vector<16xf32> to vector<16x1xf32>
    %15 = vector.broadcast %14 : vector<16x1xf32> to vector<16x16xf32>
    %16 = arith.subf %12, %15 : vector<16x16xf32>
    %17 = math.exp %16 : vector<16x16xf32>
    %cst_10 = arith.constant dense<0.000000e+00> : vector<16xf32>
    %18 = vector.multi_reduction <add>, %17, %cst_10 [1] : vector<16x16xf32> to vector<16xf32>
    %19 = vector.shape_cast %18 : vector<16xf32> to vector<16x1xf32>
    %20 = math.log %19 : vector<16x1xf32>
    %21 = arith.addf %20, %14 : vector<16x1xf32>
    %22 = vector.shape_cast %21 : vector<16x1xf32> to vector<1x16x1xf32>
    %cst_11 = arith.constant dense<0.000000e+00> : vector<1xf32>
    %23 = vector.multi_reduction <add>, %22, %cst_11 [1, 2] : vector<1x16x1xf32> to vector<1xf32>
    %24 = vector.shape_cast %23 : vector<1xf32> to vector<1x1x1xf32>
    %25 = vector.extract %24[0, 0, 0] : f32 from vector<1x1x1xf32>
    %cst_12 = arith.constant 2.000000e+00 : f32
    %cst_13 = arith.constant 2.000000e+00 : f32
    %26 = arith.mulf %cst_12, %cst_13 : f32
    %27 = arith.mulf %0, %1 : vector<8x32xf32>
    %28 = vector.shape_cast %27 : vector<8x32xf32> to vector<1x8x32xf32>
    %cst_14 = arith.constant dense<0.000000e+00> : vector<1xf32>
    %29 = vector.multi_reduction <add>, %28, %cst_14 [1, 2] : vector<1x8x32xf32> to vector<1xf32>
    %30 = vector.shape_cast %29 : vector<1xf32> to vector<1x1x1xf32>
    %31 = vector.extract %30[0, 0, 0] : f32 from vector<1x1x1xf32>
    %32 = arith.mulf %26, %31 : f32
    %33 = arith.subf %25, %32 : f32
    %cst_15 = arith.constant 6.250000e-02 : f32
    %34 = arith.mulf %33, %cst_15 : f32
    %35 = tpu.concatenate %2, %3 in 1 : vector<8x8xf32>, vector<8x8xf32> -> vector<8x16xf32>
    %cst_16 = arith.constant dense<0.000000e+00> : vector<16xf32>
    %36 = vector.multi_reduction <add>, %35, %cst_16 [0] : vector<8x16xf32> to vector<16xf32>
    %37 = vector.shape_cast %36 : vector<16xf32> to vector<1x16xf32>
    %38 = arith.mulf %35, %35 : vector<8x16xf32>
    %cst_17 = arith.constant dense<0.000000e+00> : vector<16xf32>
    %39 = vector.multi_reduction <add>, %38, %cst_17 [0] : vector<8x16xf32> to vector<16xf32>
    %40 = vector.shape_cast %39 : vector<16xf32> to vector<1x16xf32>
    %cst_18 = arith.constant 1.000000e-16 : f32
    %41 = vector.broadcast %cst_18 : f32 to vector<1x16xf32>
    %42 = arith.maximumf %40, %41 : vector<1x16xf32>
    %43 = math.rsqrt %42 : vector<1x16xf32>
    %44 = vector.broadcast %43 : vector<1x16xf32> to vector<8x16xf32>
    %45 = arith.mulf %35, %44 : vector<8x16xf32>
    %cst_19 = arith.constant dense<0.000000e+00> : vector<16x16xf32>
    %46 = tpu.matmul %45, %45, %cst_19 {dimension_numbers = #tpu.dot_dimension_numbers<[0], [0], [1], [1], [0, 1, 1, 1], [], []>} : vector<8x16xf32>, vector<8x16xf32>, vector<16x16xf32> -> vector<16x16xf32>
    %cst_20 = arith.constant 2.000000e+00 : f32
    %47 = vector.broadcast %cst_20 : f32 to vector<16x16xf32>
    %48 = arith.mulf %46, %47 : vector<16x16xf32>
    %cst_21 = arith.constant -1.000000e+30 : f32
    %49 = vector.broadcast %cst_21 : f32 to vector<16x16xf32>
    %50 = arith.select %6, %49, %48 : vector<16x16xi1>, vector<16x16xf32>
    %cst_22 = arith.constant dense<0xFF800000> : vector<16xf32>
    %51 = vector.multi_reduction <maximumf>, %50, %cst_22 [1] : vector<16x16xf32> to vector<16xf32>
    %52 = vector.shape_cast %51 : vector<16xf32> to vector<16x1xf32>
    %53 = vector.broadcast %52 : vector<16x1xf32> to vector<16x16xf32>
    %54 = arith.subf %50, %53 : vector<16x16xf32>
    %55 = math.exp %54 : vector<16x16xf32>
    %cst_23 = arith.constant dense<0.000000e+00> : vector<16xf32>
    %56 = vector.multi_reduction <add>, %55, %cst_23 [1] : vector<16x16xf32> to vector<16xf32>
    %57 = vector.shape_cast %56 : vector<16xf32> to vector<16x1xf32>
    %58 = math.log %57 : vector<16x1xf32>
    %59 = arith.addf %58, %52 : vector<16x1xf32>
    %60 = vector.shape_cast %59 : vector<16x1xf32> to vector<1x16x1xf32>
    %cst_24 = arith.constant dense<0.000000e+00> : vector<1xf32>
    %61 = vector.multi_reduction <add>, %60, %cst_24 [1, 2] : vector<1x16x1xf32> to vector<1xf32>
    %62 = vector.shape_cast %61 : vector<1xf32> to vector<1x1x1xf32>
    %63 = vector.extract %62[0, 0, 0] : f32 from vector<1x1x1xf32>
    %cst_25 = arith.constant 2.000000e+00 : f32
    %cst_26 = arith.constant 2.000000e+00 : f32
    %64 = arith.mulf %cst_25, %cst_26 : f32
    %65 = vector.extract_strided_slice %45 {offsets = [0, 0], sizes = [8, 8], strides = [1, 1]} : vector<8x16xf32> to vector<8x8xf32>
    %66 = vector.extract_strided_slice %45 {offsets = [0, 8], sizes = [8, 8], strides = [1, 1]} : vector<8x16xf32> to vector<8x8xf32>
    %67 = arith.mulf %65, %66 : vector<8x8xf32>
    %68 = vector.shape_cast %67 : vector<8x8xf32> to vector<1x8x8xf32>
    %cst_27 = arith.constant dense<0.000000e+00> : vector<1xf32>
    %69 = vector.multi_reduction <add>, %68, %cst_27 [1, 2] : vector<1x8x8xf32> to vector<1xf32>
    %70 = vector.shape_cast %69 : vector<1xf32> to vector<1x1x1xf32>
    %71 = vector.extract %70[0, 0, 0] : f32 from vector<1x1x1xf32>
    %72 = arith.mulf %64, %71 : f32
    %73 = arith.subf %63, %72 : f32
    %cst_28 = arith.constant 6.250000e-02 : f32
    %74 = arith.mulf %73, %cst_28 : f32
    %75 = vector.extract_strided_slice %37 {offsets = [0, 0], sizes = [1, 8], strides = [1, 1]} : vector<1x16xf32> to vector<1x8xf32>
    %cst_29 = arith.constant dense<0.000000e+00> : vector<1xf32>
    %76 = vector.multi_reduction <add>, %75, %cst_29 [1] : vector<1x8xf32> to vector<1xf32>
    %77 = vector.shape_cast %76 : vector<1xf32> to vector<1x1xf32>
    %78 = tpu.reciprocal %77 {approx = true} : vector<1x1xf32> -> vector<1x1xf32>
    %79 = vector.broadcast %78 : vector<1x1xf32> to vector<1x8xf32>
    %80 = arith.mulf %75, %79 : vector<1x8xf32>
    %cst_30 = arith.constant 9.99999996E-13 : f32
    %81 = vector.broadcast %cst_30 : f32 to vector<1x8xf32>
    %82 = arith.maximumf %80, %81 : vector<1x8xf32>
    %83 = math.log %82 : vector<1x8xf32>
    %84 = arith.mulf %80, %83 : vector<1x8xf32>
    %85 = vector.shape_cast %84 : vector<1x8xf32> to vector<1x1x8xf32>
    %cst_31 = arith.constant dense<0.000000e+00> : vector<1xf32>
    %86 = vector.multi_reduction <add>, %85, %cst_31 [1, 2] : vector<1x1x8xf32> to vector<1xf32>
    %87 = vector.shape_cast %86 : vector<1xf32> to vector<1x1x1xf32>
    %88 = vector.extract %87[0, 0, 0] : f32 from vector<1x1x1xf32>
    %89 = vector.extract_strided_slice %37 {offsets = [0, 8], sizes = [1, 8], strides = [1, 1]} : vector<1x16xf32> to vector<1x8xf32>
    %cst_32 = arith.constant dense<0.000000e+00> : vector<1xf32>
    %90 = vector.multi_reduction <add>, %89, %cst_32 [1] : vector<1x8xf32> to vector<1xf32>
    %91 = vector.shape_cast %90 : vector<1xf32> to vector<1x1xf32>
    %92 = tpu.reciprocal %91 {approx = true} : vector<1x1xf32> -> vector<1x1xf32>
    %93 = vector.broadcast %92 : vector<1x1xf32> to vector<1x8xf32>
    %94 = arith.mulf %89, %93 : vector<1x8xf32>
    %cst_33 = arith.constant 9.99999996E-13 : f32
    %95 = vector.broadcast %cst_33 : f32 to vector<1x8xf32>
    %96 = arith.maximumf %94, %95 : vector<1x8xf32>
    %97 = math.log %96 : vector<1x8xf32>
    %98 = arith.mulf %94, %97 : vector<1x8xf32>
    %99 = vector.shape_cast %98 : vector<1x8xf32> to vector<1x1x8xf32>
    %cst_34 = arith.constant dense<0.000000e+00> : vector<1xf32>
    %100 = vector.multi_reduction <add>, %99, %cst_34 [1, 2] : vector<1x1x8xf32> to vector<1xf32>
    %101 = vector.shape_cast %100 : vector<1xf32> to vector<1x1x1xf32>
    %102 = vector.extract %101[0, 0, 0] : f32 from vector<1x1x1xf32>
    %103 = arith.addf %88, %102 : f32
    %cst_35 = arith.constant 5.000000e-01 : f32
    %104 = arith.mulf %cst_35, %34 : f32
    %105 = arith.addf %74, %103 : f32
    %cst_36 = arith.constant 5.000000e-01 : f32
    %106 = arith.mulf %cst_36, %105 : f32
    %107 = arith.addf %104, %106 : f32
    %c0_37 = arith.constant 0 : index
    %108 = memref.load %arg4[%c0_37] : memref<1xf32, #tpu.memory_space<smem>>
    memref.store %107, %arg4[%c0_37] : memref<1xf32, #tpu.memory_space<smem>>
    return
  }
}

</mosaic_0001>

<llo_original>
// kernel: cc_loss.1
$region0: #{cc_loss.1}
  #allocation0 [shape = 'u32[]', space=smem, size = 0x4, offset = 0x4, fixed_abs, tag = 'smem constant byte address 0x4 - core index']
  #allocation1 [shape = 'u32[72,128]{1,0:T(1,128)}', space=vmem, size = 0x9000, scoped, tag = 'internal scratch']
  %s0 = inlined_call_operand.hbm [shape: f32[8,32], index: 0, kind: input, shape index: {}]
  %s1 = inlined_call_operand.hbm [shape: f32[8,32], index: 1, kind: input, shape index: {}]
  %s2 = inlined_call_operand.hbm [shape: f32[8,8], index: 2, kind: input, shape index: {}]
  %s3 = inlined_call_operand.hbm [shape: f32[8,8], index: 3, kind: input, shape index: {}]
  %s4 = inlined_call_operand.hbm [shape: f32[1], index: 4, kind: output, shape index: {}]
  %s5 = sld [smem:[#allocation0]]
  $region42: #{cc_loss.1} parent=0
    _
  %s7 = ssub.s32 1, %s5
  %s8 = scalar_select 0, %s7, %s5
  $region1: #{cc_loss.1} parent=0
    #allocation2 [shape = 'u8[4096]{0}', space=vmem, size = 0x1000, scoped, tag = 'input window, operand 0, single buffered']
    #allocation3 [shape = 's32[1]{0}', space=sflag, size = 0x4, scoped, tag = 'scoped memory for cc_loss.1']
    #allocation4 [shape = 's32[1]{0}', space=sflag, size = 0x4, scoped, tag = 'scoped memory for cc_loss.1']
    #allocation5 [shape = 'u8[4096]{0}', space=vmem, size = 0x1000, scoped, tag = 'input window, operand 1, single buffered']
    #allocation6 [shape = 's32[1]{0}', space=sflag, size = 0x4, scoped, tag = 'scoped memory for cc_loss.1']
    #allocation7 [shape = 'u8[4096]{0}', space=vmem, size = 0x1000, scoped, tag = 'input window, operand 2, single buffered']
    #allocation8 [shape = 'u8[4096]{0}', space=vmem, size = 0x1000, scoped, tag = 'input window, operand 3, single buffered']
    #allocation9 [shape = 's32[1]{0}', space=sflag, size = 0x4, scoped, tag = 'scoped memory for cc_loss.1']
    #allocation10 [shape = 'u8[512]{0}', space=smem, size = 0x200, scoped, tag = 'output window, operand 0, single buffered']
    %9 = vsyncpa [#allocation3], 0
    %10 = vsyncpa [#allocation6], 0
    %11 = vsyncpa [#allocation9], 0
    %12 = vsyncpa [#allocation4], 0
    // Predicated region
    $region2: #{cc_loss.1} parent=1 // pred_check
      _
    $region3: #{cc_loss.1} parent=1 // pred_check_branch
      %14 = sbr.rel (0) target = $region5
    $region4: #{cc_loss.1} parent=1 // pred_region
      %16 = vsyncadd [#allocation3], 0
      %s18 = sshll.u32 %s0, 4
      %s19 = int_to_ptr.hbm [resolvable:$true] %s18
      %s20 = sshll.u32 [#allocation2], 4
      %s21 = int_to_ptr.vmem [resolvable:$true] %s20
      %23 = dma.hbm_to_vmem [thread:$0]  %s19, 128, %s21, [#allocation3]
    $region5: #{cc_loss.1} parent=1 // pred_fallthru
      _
    // Predicated region
    $region6: #{cc_loss.1} parent=1 // pred_check
      _
    $region7: #{cc_loss.1} parent=1 // pred_check_branch
      %25 = sbr.rel (0) target = $region9
    $region8: #{cc_loss.1} parent=1 // pred_region
      %27 = vsyncadd [#allocation6], 0
      %s29 = sshll.u32 %s1, 4
      %s30 = int_to_ptr.hbm [resolvable:$true] %s29
      %s31 = sshll.u32 [#allocation5], 4
      %s32 = int_to_ptr.vmem [resolvable:$true] %s31
      %34 = dma.hbm_to_vmem [thread:$0]  %s30, 128, %s32, [#allocation6]
    $region9: #{cc_loss.1} parent=1 // pred_fallthru
      _
    // Predicated region
    $region10: #{cc_loss.1} parent=1 // pred_check
      _
    $region11: #{cc_loss.1} parent=1 // pred_check_branch
      %36 = sbr.rel (0) target = $region13
    $region12: #{cc_loss.1} parent=1 // pred_region
      %38 = vsyncadd [#allocation6], 0
      %s40 = sshll.u32 %s2, 4
      %s41 = int_to_ptr.hbm [resolvable:$true] %s40
      %s42 = sshll.u32 [#allocation7], 4
      %s43 = int_to_ptr.vmem [resolvable:$true] %s42
      %45 = dma.hbm_to_vmem [thread:$0]  %s41, 128, %s43, [#allocation6]
    $region13: #{cc_loss.1} parent=1 // pred_fallthru
      _
    // Predicated region
    $region14: #{cc_loss.1} parent=1 // pred_check
      _
    $region15: #{cc_loss.1} parent=1 // pred_check_branch
      %47 = sbr.rel (0) target = $region17
    $region16: #{cc_loss.1} parent=1 // pred_region
      %49 = vsyncadd [#allocation9], 0
      %s51 = sshll.u32 %s3, 4
      %s52 = int_to_ptr.hbm [resolvable:$true] %s51
      %s53 = sshll.u32 [#allocation8], 4
      %s54 = int_to_ptr.vmem [resolvable:$true] %s53
      %56 = dma.hbm_to_vmem [thread:$0]  %s52, 128, %s54, [#allocation9]
    $region17: #{cc_loss.1} parent=1 // pred_fallthru
      _
    // Predicated region
    $region18: #{cc_loss.1} parent=1 // pred_check
      _
    $region19: #{cc_loss.1} parent=1 // pred_check_branch
      %58 = sbr.rel (0) target = $region21
    $region20: #{cc_loss.1} parent=1 // pred_region
      %60 = dma.done [#allocation3], 128
    $region21: #{cc_loss.1} parent=1 // pred_fallthru
      _
    // Predicated region
    $region22: #{cc_loss.1} parent=1 // pred_check
      _
    $region23: #{cc_loss.1} parent=1 // pred_check_branch
      %62 = sbr.rel (0) target = $region25
    $region24: #{cc_loss.1} parent=1 // pred_region
      %64 = dma.done [#allocation6], 128
    $region25: #{cc_loss.1} parent=1 // pred_fallthru
      _
    // Predicated region
    $region26: #{cc_loss.1} parent=1 // pred_check
      _
    $region27: #{cc_loss.1} parent=1 // pred_check_branch
      %66 = sbr.rel (0) target = $region29
    $region28: #{cc_loss.1} parent=1 // pred_region
      %68 = dma.done [#allocation6], 128
    $region29: #{cc_loss.1} parent=1 // pred_fallthru
      _
    // Predicated region
    $region30: #{cc_loss.1} parent=1 // pred_check
      _
    $region31: #{cc_loss.1} parent=1 // pred_check_branch
      %70 = sbr.rel (0) target = $region33
    $region32: #{cc_loss.1} parent=1 // pred_region
      %72 = dma.done [#allocation9], 128
    $region33: #{cc_loss.1} parent=1 // pred_fallthru
      _
    %v73 = vld [vmem:[#allocation2] sm:$0xff]
    %v74 = vld [vmem:[#allocation5] sm:$0xff]
    %v75 = vld [vmem:[#allocation7] sm:$0xff]
    %v76 = vld [vmem:[#allocation8] sm:$0xff]
    %v77 = vlaneseq
    %v78 = vshrl.u32 %v77, 7
    %v79 = vadd.s32 %v78, 8
    %v80 = vlaneseq
    %v81 = vand.u32 %v80, 127
    %vm82 = vcmp.eq.s32.totalorder %v78, %v81
    %vm83 = vcmp.eq.s32.totalorder %v79, %v81
    %vm84 = vcmask 261120
    %v86 = vsel %vm84, %v73, 0
    %v89 = vsel %vm84, %v74, 0
    %91 = vmatpush.xpose.msra.mxu0 0.0
    %92 = vmatpush.xpose.msra.mxu0 0.0
    %93 = vmatpush.xpose.msra.mxu0 0.0
    %94 = vmatpush.xpose.msra.mxu0 0.0
    %95 = vmatpush.xpose.msra.mxu0 0.0
    %96 = vmatpush.xpose.msra.mxu0 0.0
    %97 = vmatpush.xpose.msra.mxu0 0.0
    %98 = vmatpush.xpose.msra.mxu0 0.0
    %99 = vmatpush.xpose.msra.mxu0 0.0
    %100 = vmatpush.xpose.msra.mxu0 0.0
    %101 = vmatpush.xpose.msra.mxu0 0.0
    %102 = vmatpush.xpose.msra.mxu0 0.0
    %103 = vmatpush.xpose.msra.mxu0 0.0
    %104 = vmatpush.xpose.msra.mxu0 0.0
    %105 = vmatpush.xpose.msra.mxu0 %v89
    %106 = vmatpush.xpose.msra.mxu0 %v86
    %107 = vmatmul.f32.gmra.mxu0 %v86
    %v108 = vpop.f32.mrf.mxu0
    %v109 = vadd.f32 0.0, %v108
    %110 = vmatmul.f32.gmra.mxu0 %v89
    %v111 = vpop.f32.mrf.mxu0
    %v112 = vadd.f32 0.0, %v111
    %113 = vdwg.mxu0
    %v114 = vmul.f32 %v109, 2.0
    %v115 = vmul.f32 %v112, 2.0
    %v116 = vsel %vm82, -1e+30, %v114
    %v117 = vsel %vm83, -1e+30, %v115
    %vm118 = vcmask 130048
    %v119 = vsel %vm118, %v116, -inf
    %120 = vmax.xlane.f32.xlu0 %v119
    %v121 = vpop.xlane.xlu0 %120
    %v122 = vsel %vm118, %v117, -inf
    %123 = vmax.xlane.f32.xlu0 %v122
    %v124 = vpop.xlane.xlu0 %123
    %v125 = vsub.f32 %v116, %v121
    %v126 = vsub.f32 %v117, %v124
    %v127 = vmul.f32 %v125, 1.442695
    %v128 = vpow.pop %v127
    %v129 = vmul.f32 %v126, 1.442695
    %v130 = vpow.pop %v129
    %v131 = vsel %vm118, %v128, 0.0
    %132 = vadd.xlane.f32.xlu0 %v131
    %v133 = vpop.xlane.xlu0 %132
    %v134 = vsel %vm118, %v130, 0.0
    %135 = vadd.xlane.f32.xlu0 %v134
    %v136 = vpop.xlane.xlu0 %135
    %v137 = vlog2.pop %v133
    %v138 = vmul.f32 %v137, 0.6931472
    %v139 = vlog2.pop %v136
    %v140 = vmul.f32 %v139, 0.6931472
    %v141 = vadd.f32 %v138, %v121
    %v142 = vadd.f32 %v140, %v124
    %vm143 = vcmask 7168
    %v144 = vsel %vm143, %v141, 0.0
    %v145 = vsel %vm143, %v142, 0.0
    %v146 = vadd.f32 %v144, %v145
    %147 = vadd.xlane.f32.xlu0 %v146
    %v148 = vpop.xlane.xlu0 %147
    %v149 = vrot.slane %v148, 4
    %v150 = vadd.f32 %v148, %v149
    %v151 = vrot.slane %v150, 2
    %v152 = vadd.f32 %v150, %v151
    %v153 = vrot.slane %v152, 1
    %v154 = vadd.f32 %v152, %v153
    %s155 = vtos %v154
    %v156 = vmul.f32 %v73, %v74
    %v157 = vsel %vm84, %v156, 0.0
    %158 = vadd.xlane.f32.xlu0 %v157
    %v159 = vpop.xlane.xlu0 %158
    %v160 = vrot.slane %v159, 4
    %v161 = vadd.f32 %v159, %v160
    %v162 = vrot.slane %v161, 2
    %v163 = vadd.f32 %v161, %v162
    %v164 = vrot.slane %v163, 1
    %v165 = vadd.f32 %v163, %v164
    %s166 = vtos %v165
    %s167 = smul.f32 %s166, 4.0
    %s168 = ssub.f32 %s155, %s167
    %s169 = smul.f32 %s168, 0.0625
    %171 = vrot.lane.b32.xlu0 %v76, 8
    %v172 = vpop.permute.xlu0 %171
    %vm174 = vcmask 64512
    %v175 = vsel %vm174, %v75, %v172
    %v176 = vsel %vm118, %v175, 0.0
    %v177 = vrot.slane %v176, 4
    %v178 = vadd.f32 %v176, %v177
    %v179 = vrot.slane %v178, 2
    %v180 = vadd.f32 %v178, %v179
    %v181 = vrot.slane %v180, 1
    %v182 = vadd.f32 %v180, %v181
    %v183 = vmul.f32 %v175, %v175
    %v184 = vsel %vm118, %v183, 0.0
    %v185 = vrot.slane %v184, 4
    %v186 = vadd.f32 %v184, %v185
    %v187 = vrot.slane %v186, 2
    %v188 = vadd.f32 %v186, %v187
    %v189 = vrot.slane %v188, 1
    %v190 = vadd.f32 %v188, %v189
    %v191 = vmax.f32 %v190, 1e-16
    %v192 = vrsqrt.pop %v191
    %v193 = vmul.f32 %v192, %v191
    %v194 = vmul.f32 %v193, %v192
    %v195 = vmul.f32 0.5, %v194
    %v196 = vsub.f32 1.5, %v195
    %v197 = vmul.f32 %v192, %v196
    %vm198 = vweird.f32 %v191
    %vm199 = vweird.f32 %v192
    %vm200 = vmor %vm198, %vm199
    %v201 = vsel %vm200, %v192, %v197
    %v202 = vmul.f32 %v175, %v201
    %203 = vxpose.xlu0.b32.start [1/16] %v202, 128
    %204 = vxpose.xlu0.b32.cont [2/16] 0.0, 128
    %205 = vxpose.xlu0.b32.cont [3/16] 0.0, 128
    %206 = vxpose.xlu0.b32.cont [4/16] 0.0, 128
    %207 = vxpose.xlu0.b32.cont [5/16] 0.0, 128
    %208 = vxpose.xlu0.b32.cont [6/16] 0.0, 128
    %209 = vxpose.xlu0.b32.cont [7/16] 0.0, 128
    %210 = vxpose.xlu0.b32.cont [8/16] 0.0, 128
    %211 = vxpose.xlu0.b32.cont [9/16] 0.0, 128
    %212 = vxpose.xlu0.b32.cont [10/16] 0.0, 128
    %213 = vxpose.xlu0.b32.cont [11/16] 0.0, 128
    %214 = vxpose.xlu0.b32.cont [12/16] 0.0, 128
    %215 = vxpose.xlu0.b32.cont [13/16] 0.0, 128
    %216 = vxpose.xlu0.b32.cont [14/16] 0.0, 128
    %217 = vxpose.xlu0.b32.cont [15/16] 0.0, 128
    %218 = vxpose.xlu0.b32.end [16/16] 0.0, 128
    %v219 = vpop.trf.xlu0
    %v220 = vpop.trf.xlu0
    %v221 = vpop.trf.xlu0
    %v222 = vpop.trf.xlu0
    %v223 = vpop.trf.xlu0
    %v224 = vpop.trf.xlu0
    %v225 = vpop.trf.xlu0
    %v226 = vpop.trf.xlu0
    %v227 = vpop.trf.xlu0
    %v228 = vpop.trf.xlu0
    %v229 = vpop.trf.xlu0
    %v230 = vpop.trf.xlu0
    %v231 = vpop.trf.xlu0
    %v232 = vpop.trf.xlu0
    %v233 = vpop.trf.xlu0
    %v234 = vpop.trf.xlu0
    %v236 = vsel %vm174, %v219, 0
    %v239 = vsel %vm174, %v220, 0
    %241 = vmatpush.msra.mxu0 0.0
    %242 = vmatpush.msra.mxu0 0.0
    %243 = vmatpush.msra.mxu0 0.0
    %244 = vmatpush.msra.mxu0 0.0
    %245 = vmatpush.msra.mxu0 0.0
    %246 = vmatpush.msra.mxu0 0.0
    %247 = vmatpush.msra.mxu0 0.0
    %248 = vmatpush.msra.mxu0 0.0
    %249 = vmatpush.msra.mxu0 0.0
    %250 = vmatpush.msra.mxu0 0.0
    %251 = vmatpush.msra.mxu0 0.0
    %252 = vmatpush.msra.mxu0 0.0
    %253 = vmatpush.msra.mxu0 0.0
    %254 = vmatpush.msra.mxu0 0.0
    %255 = vmatpush.msra.mxu0 0.0
    %256 = vmatpush.msra.mxu0 %v202
    %257 = vmatmul.f32.gmra.mxu0 %v236
    %v258 = vpop.f32.mrf.mxu0
    %v259 = vadd.f32 0.0, %v258
    %260 = vmatmul.f32.gmra.mxu0 %v239
    %v261 = vpop.f32.mrf.mxu0
    %v262 = vadd.f32 0.0, %v261
    %263 = vdwg.mxu0
    %v264 = vmul.f32 %v259, 2.0
    %v265 = vmul.f32 %v262, 2.0
    %v266 = vsel %vm82, -1e+30, %v264
    %v267 = vsel %vm83, -1e+30, %v265
    %v268 = vsel %vm118, %v266, -inf
    %269 = vmax.xlane.f32.xlu0 %v268
    %v270 = vpop.xlane.xlu0 %269
    %v271 = vsel %vm118, %v267, -inf
    %272 = vmax.xlane.f32.xlu0 %v271
    %v273 = vpop.xlane.xlu0 %272
    %v274 = vsub.f32 %v266, %v270
    %v275 = vsub.f32 %v267, %v273
    %v276 = vmul.f32 %v274, 1.442695
    %v277 = vpow.pop %v276
    %v278 = vmul.f32 %v275, 1.442695
    %v279 = vpow.pop %v278
    %v280 = vsel %vm118, %v277, 0.0
    %281 = vadd.xlane.f32.xlu0 %v280
    %v282 = vpop.xlane.xlu0 %281
    %v283 = vsel %vm118, %v279, 0.0
    %284 = vadd.xlane.f32.xlu0 %v283
    %v285 = vpop.xlane.xlu0 %284
    %v286 = vlog2.pop %v282
    %v287 = vmul.f32 %v286, 0.6931472
    %v288 = vlog2.pop %v285
    %v289 = vmul.f32 %v288, 0.6931472
    %v290 = vadd.f32 %v287, %v270
    %v291 = vadd.f32 %v289, %v273
    %v292 = vsel %vm143, %v290, 0.0
    %v293 = vsel %vm143, %v291, 0.0
    %v294 = vadd.f32 %v292, %v293
    %295 = vadd.xlane.f32.xlu0 %v294
    %v296 = vpop.xlane.xlu0 %295
    %v297 = vrot.slane %v296, 4
    %v298 = vadd.f32 %v296, %v297
    %v299 = vrot.slane %v298, 2
    %v300 = vadd.f32 %v298, %v299
    %v301 = vrot.slane %v300, 1
    %v302 = vadd.f32 %v300, %v301
    %s303 = vtos %v302
    %305 = vrot.lane.b32.xlu0 %v202, 120
    %v306 = vpop.permute.xlu0 %305
    %v308 = vmul.f32 %v202, %v306
    %v309 = vsel %vm174, %v308, 0.0
    %310 = vadd.xlane.f32.xlu0 %v309
    %v311 = vpop.xlane.xlu0 %310
    %v312 = vrot.slane %v311, 4
    %v313 = vadd.f32 %v311, %v312
    %v314 = vrot.slane %v313, 2
    %v315 = vadd.f32 %v313, %v314
    %v316 = vrot.slane %v315, 1
    %v317 = vadd.f32 %v315, %v316
    %s318 = vtos %v317
    %s319 = smul.f32 %s318, 4.0
    %s320 = ssub.f32 %s303, %s319
    %s321 = smul.f32 %s320, 0.0625
    %v322 = vsel %vm174, %v182, 0.0
    %323 = vadd.xlane.f32.xlu0 %v322
    %v324 = vpop.xlane.xlu0 %323
    %v325 = vrcp.pop %v324
    %v326 = vmul.f32 %v182, %v325
    %v327 = vmax.f32 %v326, 1e-12
    %v328 = vlog2.pop %v327
    %v329 = vmul.f32 %v328, 0.6931472
    %v330 = vmul.f32 %v326, %v329
    %vm331 = vcmask 57344
    %v332 = vsel %vm331, %v330, 0.0
    %333 = vadd.xlane.f32.xlu0 %v332
    %v334 = vpop.xlane.xlu0 %333
    %v335 = vrot.slane %v334, 4
    %v336 = vadd.f32 %v334, %v335
    %v337 = vrot.slane %v336, 2
    %v338 = vadd.f32 %v336, %v337
    %v339 = vrot.slane %v338, 1
    %v340 = vadd.f32 %v338, %v339
    %s341 = vtos %v340
    %343 = vrot.lane.b32.xlu0 %v182, 120
    %v344 = vpop.permute.xlu0 %343
    %v346 = vsel %vm174, %v344, 0.0
    %347 = vadd.xlane.f32.xlu0 %v346
    %v348 = vpop.xlane.xlu0 %347
    %v349 = vrcp.pop %v348
    %v350 = vmul.f32 %v182, %v349
    %v351 = vmax.f32 %v350, 1e-12
    %v352 = vlog2.pop %v351
    %v353 = vmul.f32 %v352, 0.6931472
    %v354 = vmul.f32 %v350, %v353
    %356 = vrot.lane.b32.xlu0 %v354, 120
    %v357 = vpop.permute.xlu0 %356
    %v359 = vsel %vm331, %v357, 0.0
    %360 = vadd.xlane.f32.xlu0 %v359
    %v361 = vpop.xlane.xlu0 %360
    %v362 = vrot.slane %v361, 4
    %v363 = vadd.f32 %v361, %v362
    %v364 = vrot.slane %v363, 2
    %v365 = vadd.f32 %v363, %v364
    %v366 = vrot.slane %v365, 1
    %v367 = vadd.f32 %v365, %v366
    %s368 = vtos %v367
    %s369 = sadd.f32 %s341, %s368
    %s370 = smul.f32 %s169, 0.5
    %s371 = sadd.f32 %s321, %s369
    %s372 = smul.f32 %s371, 0.5
    %s373 = sadd.f32 %s370, %s372
    %s374 = scalar_lea.smem [#allocation10], 0
    %375 = sst [smem:[%s374]] %s373
    // Predicated region
    $region34: #{cc_loss.1} parent=1 // pred_check
      _
    $region35: #{cc_loss.1} parent=1 // pred_check_branch
      %377 = sbr.rel (0) target = $region37
    $region36: #{cc_loss.1} parent=1 // pred_region
      %379 = vsyncadd [#allocation4], 0
      %s381 = sshll.u32 %s4, 4
      %s382 = int_to_ptr.hbm [resolvable:$true] %s381
      %384 = dma.smem_to_hbm [#allocation10], 16, %s382, [#allocation4]
    $region37: #{cc_loss.1} parent=1 // pred_fallthru
      _
    // Predicated region
    $region38: #{cc_loss.1} parent=1 // pred_check
      _
    $region39: #{cc_loss.1} parent=1 // pred_check_branch
      %386 = sbr.rel (0) target = $region41
    $region40: #{cc_loss.1} parent=1 // pred_region
      %388 = dma.done [#allocation4], 16
    $region41: #{cc_loss.1} parent=1 // pred_fallthru
      _
    %389 = sfence
    %390 = vsyncpa [#allocation3], 1
    %391 = vsyncpa [#allocation6], 1
    %392 = vsyncpa [#allocation9], 1
    %393 = vsyncpa [#allocation4], 1

</llo_original>
